<compile_context>
chip_gen: v5e
topology: v5e:2x2
jax: 0.10.0
libtpu: 0.0.40
codegen_flags: <defaults>
</compile_context>

<pallas_src>
import math

import jax
import jax.numpy as jnp
from jax.experimental import pallas as pl
from jax.experimental.pallas import tpu as pltpu

OUT_PAD = 128        # lane-dense merged head output width
NUM_HEAD_COLS = 4    # corr (3) + conf (1)


def _round_up(x, m):
    return ((x + m - 1) // m) * m


# ----------------------------------------------------------------------------
# Kernel: fused coor_mlp (Linear->ReLU->Linear->ReLU->Linear(3)) and
# conf_logits_decoder (Linear(1)) over a tile of rows, single merged output.
# ----------------------------------------------------------------------------
def _heads_kernel(x_ref,
                  w1_ref, b1_ref,
                  w2_ref, b2_ref,
                  w3_ref, wc_ref, bm_ref,
                  out_ref):
    xb = x_ref[...].astype(jnp.bfloat16)

    # coor_mlp trunk: bf16 MXU dots, f32 accumulate / bias / ReLU.
    h1 = jnp.dot(xb, w1_ref[...], preferred_element_type=jnp.float32) + b1_ref[...]
    h1 = jnp.maximum(h1, 0.0)
    h2 = jnp.dot(h1.astype(jnp.bfloat16), w2_ref[...],
                 preferred_element_type=jnp.float32) + b2_ref[...]
    h2 = jnp.maximum(h2, 0.0)

    # Merged heads into one lane-dense (tm, 128) accumulator:
    #   lanes 0:3  = h2 @ W3 + b3   (corr)
    #   lane  3    = x  @ Wc + bc   (conf -- from the RAW features, not h2)
    # Two small dots summed (equivalent to [h2 | x] @ [[W3],[Wc]]) to avoid an
    # unaligned minor-dim concatenate inside the kernel; traffic is identical.
    out = jnp.dot(h2.astype(jnp.bfloat16), w3_ref[...],
                  preferred_element_type=jnp.float32)
    out = out + jnp.dot(xb, wc_ref[...], preferred_element_type=jnp.float32)
    out = out + bm_ref[...]
    out_ref[...] = out.astype(out_ref.dtype)


def _apply_heads(x2d, params, *, tm=256):
    """x2d: (M, D) float32.  Returns merged (M, OUT_PAD) float32 head output."""
    M, D = x2d.shape
    w1, b1, w2, b2, w3p, wcp, bm = params

    # Clamp the row tile to the (8-rounded) problem size so tiny inputs use a
    # single exact block; large inputs get tm-row tiles with a partial tail.
    tm_eff = min(tm, _round_up(M, 8))
    grid = (pl.cdiv(M, tm_eff),)

    full = lambda shape: pl.BlockSpec(shape, lambda i: (0, 0))
    # NOTE(perf): the weight/bias blocks have a constant index_map; at large D
    # consider pipeline_mode=pl.Buffered(1) (or a VMEM-scratch preload) so they
    # are not double-buffered.  Irrelevant at D=32.

    out = pl.pallas_call(
        _heads_kernel,
        out_shape=jax.ShapeDtypeStruct((M, OUT_PAD), jnp.float32),
        grid=grid,
        in_specs=[
            pl.BlockSpec((tm_eff, D), lambda i: (i, 0)),   # x row tile
            full((D, D)), full((1, D)),                    # W1 (bf16), b1 (f32)
            full((D, D)), full((1, D)),                    # W2 (bf16), b2 (f32)
            full((D, OUT_PAD)),                            # W3 padded to 128 cols (bf16)
            full((D, OUT_PAD)),                            # Wc padded to 128 cols (bf16)
            full((1, OUT_PAD)),                            # merged bias b3|bc (f32)
        ],
        out_specs=pl.BlockSpec((tm_eff, OUT_PAD), lambda i: (i, 0)),
        compiler_params=pltpu.CompilerParams(
            dimension_semantics=("parallel",)),            # shard rows across v7x's 2 TCs
    )(x2d, w1, b1, w2, b2, w3p, wcp, bm)
    return out


# ----------------------------------------------------------------------------
# Parameter construction (mimics nn.Linear default init; stored (in, out)).
# ----------------------------------------------------------------------------
def init_params(key, d_embed):
    def linear(key, fan_in, fan_out):
        kw, kb = jax.random.split(key)
        bound = 1.0 / math.sqrt(fan_in)
        w = jax.random.uniform(kw, (fan_in, fan_out), jnp.float32, -bound, bound)
        b = jax.random.uniform(kb, (1, fan_out), jnp.float32, -bound, bound)
        return w, b

    k1, k2, k3, kc = jax.random.split(key, 4)
    w1, b1 = linear(k1, d_embed, d_embed)
    w2, b2 = linear(k2, d_embed, d_embed)
    w3, b3 = linear(k3, d_embed, 3)
    wc, bc = linear(kc, d_embed, 1)

    # Merged-head weights: corr occupies lanes 0:3, conf occupies lane 3.
    w3p = jnp.zeros((d_embed, OUT_PAD), jnp.float32).at[:, :3].set(w3)
    wcp = jnp.zeros((d_embed, OUT_PAD), jnp.float32).at[:, 3:4].set(wc)
    bm = (jnp.zeros((1, OUT_PAD), jnp.float32)
          .at[:, :3].set(b3)
          .at[:, 3:4].set(bc))

    return (w1.astype(jnp.bfloat16), b1,
            w2.astype(jnp.bfloat16), b2,
            w3p.astype(jnp.bfloat16), wcp.astype(jnp.bfloat16), bm)


# ----------------------------------------------------------------------------
# pad_sequence / unpad_sequences glue (same semantics as the PyTorch helpers).
# ----------------------------------------------------------------------------
def pad_sequence(seq_list):
    """seq_list: list of (L_b, 3). Returns padded (L_max, B, 3), mask (B, L_max), lens."""
    lens = [s.shape[0] for s in seq_list]
    l_max = max(lens)
    padded = jnp.stack(
        [jnp.pad(s, ((0, l_max - s.shape[0]), (0, 0))) for s in seq_list], axis=1)
    mask = jnp.stack([jnp.arange(l_max) >= l for l in lens], axis=0)
    return padded, mask, lens


def unpad_sequences(padded, lens):
    """padded: (N_pred, L_max, B, C) -> list of B arrays (N_pred, len_b, C)."""
    return [padded[:, :lens[b], b, :] for b in range(len(lens))]


# ----------------------------------------------------------------------------
# CorrespondenceRegressor forward
# ----------------------------------------------------------------------------
def correspondence_regressor_forward(params, src_feats_padded, tgt_feats_padded,
                                     src_xyz, tgt_xyz, *, tm=256):
    # xyz lists are only used for their lengths (same as the PyTorch module).
    _, _, src_lens = pad_sequence(src_xyz)
    _, _, tgt_lens = pad_sequence(tgt_xyz)

    np_s, n_s, b_s, d = src_feats_padded.shape
    np_t, n_t, b_t, _ = tgt_feats_padded.shape

    src2d = src_feats_padded.reshape(-1, d).astype(jnp.float32)
    tgt2d = tgt_feats_padded.reshape(-1, d).astype(jnp.float32)
    m_src = src2d.shape[0]

    # One pallas_call over [src; tgt] (heads share weights).
    x2d = jnp.concatenate([src2d, tgt2d], axis=0)
    merged = _apply_heads(x2d, params, tm=tm)

    # Single narrow slice of the lane-dense slab, then cheap splits.
    head = merged[:, :NUM_HEAD_COLS]
    src_head = head[:m_src].reshape(np_s, n_s, b_s, NUM_HEAD_COLS)
    tgt_head = head[m_src:].reshape(np_t, n_t, b_t, NUM_HEAD_COLS)

    src_corr, src_overlap = src_head[..., :3], src_head[..., 3:4]
    tgt_corr, tgt_overlap = tgt_head[..., :3], tgt_head[..., 3:4]

    src_corr_list = unpad_sequences(src_corr, src_lens)
    tgt_corr_list = unpad_sequences(tgt_corr, tgt_lens)
    src_overlap_list = unpad_sequences(src_overlap, src_lens)
    tgt_overlap_list = unpad_sequences(tgt_overlap, tgt_lens)
    return src_corr_list, tgt_corr_list, src_overlap_list, tgt_overlap_list


# ----------------------------------------------------------------------------
# Pure-JAX reference (bf16 weights cast to f32; matmuls in f32).
# ----------------------------------------------------------------------------
def _ref_heads(x2d, params):
    w1, b1, w2, b2, w3p, wcp, bm = params
    w1f, w2f = w1.astype(jnp.float32), w2.astype(jnp.float32)
    w3f, wcf = w3p.astype(jnp.float32), wcp.astype(jnp.float32)
    h1 = jax.nn.relu(x2d @ w1f + b1)
    h2 = jax.nn.relu(h1 @ w2f + b2)
    out = h2 @ w3f + x2d @ wcf + bm
    return out[:, :3], out[:, 3:4]


if __name__ == "__main__":
    key = jax.random.PRNGKey(0)
    d_embed = 32
    n_pred = 2
    B = 2
    src_lens = [16, 13]
    tgt_lens = [12, 9]
    n_src, n_tgt = max(src_lens), max(tgt_lens)

    k_p, k_sf, k_tf, k_sx, k_tx = jax.random.split(key, 5)
    params = init_params(k_p, d_embed)

    src_feats_padded = jax.random.normal(k_sf, (n_pred, n_src, B, d_embed), jnp.float32)
    tgt_feats_padded = jax.random.normal(k_tf, (n_pred, n_tgt, B, d_embed), jnp.float32)
    src_xyz = [jax.random.normal(jax.random.fold_in(k_sx, b), (src_lens[b], 3))
               for b in range(B)]
    tgt_xyz = [jax.random.normal(jax.random.fold_in(k_tx, b), (tgt_lens[b], 3))
               for b in range(B)]

    outs = correspondence_regressor_forward(params, src_feats_padded,
                                            tgt_feats_padded, src_xyz, tgt_xyz)
    outs = jax.block_until_ready(outs)

    # Sanity check vs pure-JAX reference (bf16 MXU dots -> loose tolerance).
    def check(feats, lens, corr_list, conf_list, n_dim):
        ref_corr, ref_conf = _ref_heads(feats.reshape(-1, d_embed), params)
        ref_corr = ref_corr.reshape(n_pred, n_dim, B, 3)
        ref_conf = ref_conf.reshape(n_pred, n_dim, B, 1)
        ref_corr_list = unpad_sequences(ref_corr, lens)
        ref_conf_list = unpad_sequences(ref_conf, lens)
        for a, b in zip(corr_list, ref_corr_list):
            assert jnp.allclose(a, b, atol=2e-2, rtol=2e-2), "corr mismatch"
        for a, b in zip(conf_list, ref_conf_list):
            assert jnp.allclose(a, b, atol=2e-2, rtol=2e-2), "conf mismatch"

    check(src_feats_padded, src_lens, outs[0], outs[2], n_src)
    check(tgt_feats_padded, tgt_lens, outs[1], outs[3], n_tgt)

    print("KERNEL_OK")
</pallas_src>

<mosaic_0001>
module attributes {stable_mosaic.version = 11 : i64} {
  func.func @_heads_kernel(%arg0: i32, %arg1: memref<112x32xf32, #tpu.memory_space<vmem>>, %arg2: memref<32x32xbf16, #tpu.memory_space<vmem>>, %arg3: memref<1x32xf32, #tpu.memory_space<vmem>>, %arg4: memref<32x32xbf16, #tpu.memory_space<vmem>>, %arg5: memref<1x32xf32, #tpu.memory_space<vmem>>, %arg6: memref<32x128xbf16, #tpu.memory_space<vmem>>, %arg7: memref<32x128xbf16, #tpu.memory_space<vmem>>, %arg8: memref<1x128xf32, #tpu.memory_space<vmem>>, %arg9: memref<112x128xf32, #tpu.memory_space<vmem>>) attributes {dimension_semantics = [#tpu.dimension_semantics<parallel>], iteration_bounds = array<i64: 1>, scalar_prefetch = 0 : i64, scratch_operands = 0 : i64, tpu.core_type = #tpu.core_type<tc>, window_params = [{transform_indices = @transform_0, window_bounds = array<i64: 112, 32>}, {pipeline_mode = #tpu.pipeline_mode<synchronous>, transform_indices = @transform_1, window_bounds = array<i64: 32, 32>}, {pipeline_mode = #tpu.pipeline_mode<synchronous>, transform_indices = @transform_2, window_bounds = array<i64: 1, 32>}, {pipeline_mode = #tpu.pipeline_mode<synchronous>, transform_indices = @transform_3, window_bounds = array<i64: 32, 32>}, {pipeline_mode = #tpu.pipeline_mode<synchronous>, transform_indices = @transform_4, window_bounds = array<i64: 1, 32>}, {pipeline_mode = #tpu.pipeline_mode<synchronous>, transform_indices = @transform_5, window_bounds = array<i64: 32, 128>}, {pipeline_mode = #tpu.pipeline_mode<synchronous>, transform_indices = @transform_6, window_bounds = array<i64: 32, 128>}, {pipeline_mode = #tpu.pipeline_mode<synchronous>, transform_indices = @transform_7, window_bounds = array<i64: 1, 128>}, {transform_indices = @transform_8, window_bounds = array<i64: 112, 128>}]} {
    %c0 = arith.constant 0 : index
    %c0_0 = arith.constant 0 : index
    %0 = vector.load %arg1[%c0, %c0_0] : memref<112x32xf32, #tpu.memory_space<vmem>>, vector<112x32xf32>
    %1 = arith.truncf %0 : vector<112x32xf32> to vector<112x32xbf16>
    %c0_1 = arith.constant 0 : index
    %c0_2 = arith.constant 0 : index
    %2 = vector.load %arg2[%c0_1, %c0_2] : memref<32x32xbf16, #tpu.memory_space<vmem>>, vector<32x32xbf16>
    %cst = arith.constant dense<0.000000e+00> : vector<112x32xf32>
    %3 = tpu.matmul %1, %2, %cst {dimension_numbers = #tpu.dot_dimension_numbers<[1], [0], [0], [1], [0, 0, 1, 1], [], []>} : vector<112x32xbf16>, vector<32x32xbf16>, vector<112x32xf32> -> vector<112x32xf32>
    %c0_3 = arith.constant 0 : index
    %c0_4 = arith.constant 0 : index
    %4 = vector.load %arg3[%c0_3, %c0_4] : memref<1x32xf32, #tpu.memory_space<vmem>>, vector<1x32xf32>
    %5 = vector.broadcast %4 : vector<1x32xf32> to vector<112x32xf32>
    %6 = arith.addf %3, %5 : vector<112x32xf32>
    %cst_5 = arith.constant 0.000000e+00 : f32
    %7 = vector.broadcast %cst_5 : f32 to vector<112x32xf32>
    %8 = arith.maximumf %6, %7 : vector<112x32xf32>
    %9 = arith.truncf %8 : vector<112x32xf32> to vector<112x32xbf16>
    %c0_6 = arith.constant 0 : index
    %c0_7 = arith.constant 0 : index
    %10 = vector.load %arg4[%c0_6, %c0_7] : memref<32x32xbf16, #tpu.memory_space<vmem>>, vector<32x32xbf16>
    %cst_8 = arith.constant dense<0.000000e+00> : vector<112x32xf32>
    %11 = tpu.matmul %9, %10, %cst_8 {dimension_numbers = #tpu.dot_dimension_numbers<[1], [0], [0], [1], [0, 0, 1, 1], [], []>} : vector<112x32xbf16>, vector<32x32xbf16>, vector<112x32xf32> -> vector<112x32xf32>
    %c0_9 = arith.constant 0 : index
    %c0_10 = arith.constant 0 : index
    %12 = vector.load %arg5[%c0_9, %c0_10] : memref<1x32xf32, #tpu.memory_space<vmem>>, vector<1x32xf32>
    %13 = vector.broadcast %12 : vector<1x32xf32> to vector<112x32xf32>
    %14 = arith.addf %11, %13 : vector<112x32xf32>
    %cst_11 = arith.constant 0.000000e+00 : f32
    %15 = vector.broadcast %cst_11 : f32 to vector<112x32xf32>
    %16 = arith.maximumf %14, %15 : vector<112x32xf32>
    %17 = arith.truncf %16 : vector<112x32xf32> to vector<112x32xbf16>
    %c0_12 = arith.constant 0 : index
    %c0_13 = arith.constant 0 : index
    %18 = vector.load %arg6[%c0_12, %c0_13] : memref<32x128xbf16, #tpu.memory_space<vmem>>, vector<32x128xbf16>
    %cst_14 = arith.constant dense<0.000000e+00> : vector<112x128xf32>
    %19 = tpu.matmul %17, %18, %cst_14 {dimension_numbers = #tpu.dot_dimension_numbers<[1], [0], [0], [1], [0, 0, 1, 1], [], []>} : vector<112x32xbf16>, vector<32x128xbf16>, vector<112x128xf32> -> vector<112x128xf32>
    %c0_15 = arith.constant 0 : index
    %c0_16 = arith.constant 0 : index
    %20 = vector.load %arg7[%c0_15, %c0_16] : memref<32x128xbf16, #tpu.memory_space<vmem>>, vector<32x128xbf16>
    %cst_17 = arith.constant dense<0.000000e+00> : vector<112x128xf32>
    %21 = tpu.matmul %1, %20, %cst_17 {dimension_numbers = #tpu.dot_dimension_numbers<[1], [0], [0], [1], [0, 0, 1, 1], [], []>} : vector<112x32xbf16>, vector<32x128xbf16>, vector<112x128xf32> -> vector<112x128xf32>
    %22 = arith.addf %19, %21 : vector<112x128xf32>
    %c0_18 = arith.constant 0 : index
    %c0_19 = arith.constant 0 : index
    %23 = vector.load %arg8[%c0_18, %c0_19] : memref<1x128xf32, #tpu.memory_space<vmem>>, vector<1x128xf32>
    %24 = vector.broadcast %23 : vector<1x128xf32> to vector<112x128xf32>
    %25 = arith.addf %22, %24 : vector<112x128xf32>
    %c0_20 = arith.constant 0 : index
    %c0_21 = arith.constant 0 : index
    %26 = vector.load %arg9[%c0_20, %c0_21] : memref<112x128xf32, #tpu.memory_space<vmem>>, vector<112x128xf32>
    tpu.vector_store %arg9[%c0_20, %c0_21], %25 {strides = array<i32>} : memref<112x128xf32, #tpu.memory_space<vmem>>, vector<112x128xf32>,
    return
  }
  func.func @transform_0(%arg0: i32) -> (i32, i32) {
    %c0_i32 = arith.constant 0 : i32
    %c0_i32_0 = arith.constant 0 : i32
    return %arg0, %c0_i32 : i32, i32
  }
  func.func @transform_1(%arg0: i32) -> (i32, i32) {
    %c0_i32 = arith.constant 0 : i32
    %c0_i32_0 = arith.constant 0 : i32
    %c0_i32_1 = arith.constant 0 : i32
    return %c0_i32, %c0_i32_0 : i32, i32
  }
  func.func @transform_2(%arg0: i32) -> (i32, i32) {
    %c0_i32 = arith.constant 0 : i32
    %c0_i32_0 = arith.constant 0 : i32
    %c0_i32_1 = arith.constant 0 : i32
    return %c0_i32, %c0_i32_0 : i32, i32
  }
  func.func @transform_3(%arg0: i32) -> (i32, i32) {
    %c0_i32 = arith.constant 0 : i32
    %c0_i32_0 = arith.constant 0 : i32
    %c0_i32_1 = arith.constant 0 : i32
    return %c0_i32, %c0_i32_0 : i32, i32
  }
  func.func @transform_4(%arg0: i32) -> (i32, i32) {
    %c0_i32 = arith.constant 0 : i32
    %c0_i32_0 = arith.constant 0 : i32
    %c0_i32_1 = arith.constant 0 : i32
    return %c0_i32, %c0_i32_0 : i32, i32
  }
  func.func @transform_5(%arg0: i32) -> (i32, i32) {
    %c0_i32 = arith.constant 0 : i32
    %c0_i32_0 = arith.constant 0 : i32
    %c0_i32_1 = arith.constant 0 : i32
    return %c0_i32, %c0_i32_0 : i32, i32
  }
  func.func @transform_6(%arg0: i32) -> (i32, i32) {
    %c0_i32 = arith.constant 0 : i32
    %c0_i32_0 = arith.constant 0 : i32
    %c0_i32_1 = arith.constant 0 : i32
    return %c0_i32, %c0_i32_0 : i32, i32
  }
  func.func @transform_7(%arg0: i32) -> (i32, i32) {
    %c0_i32 = arith.constant 0 : i32
    %c0_i32_0 = arith.constant 0 : i32
    %c0_i32_1 = arith.constant 0 : i32
    return %c0_i32, %c0_i32_0 : i32, i32
  }
  func.func @transform_8(%arg0: i32) -> (i32, i32) {
    %c0_i32 = arith.constant 0 : i32
    %c0_i32_0 = arith.constant 0 : i32
    return %arg0, %c0_i32 : i32, i32
  }
}

</mosaic_0001>

<llo_original>
// kernel: tpu_custom_call.1
$region0: #{tpu_custom_call.1}
  #allocation0 [shape = 'u32[]', space=smem, size = 0x4, offset = 0x4, fixed_abs, tag = 'smem constant byte address 0x4 - core index']
  #allocation1 [shape = 'u32[72,128]{1,0:T(1,128)}', space=vmem, size = 0x9000, scoped, tag = 'internal scratch']
  %s0 = inlined_call_operand.vmem [shape: f32[112,32], index: 0, kind: input, shape index: {}]
  %s1 = inlined_call_operand.vmem [shape: bf16[32,32], index: 1, kind: input, shape index: {}]
  %s2 = inlined_call_operand.vmem [shape: f32[1,32], index: 2, kind: input, shape index: {}]
  %s3 = inlined_call_operand.vmem [shape: bf16[32,32], index: 3, kind: input, shape index: {}]
  %s4 = inlined_call_operand.vmem [shape: f32[1,32], index: 4, kind: input, shape index: {}]
  %s5 = inlined_call_operand.vmem [shape: bf16[32,128], index: 5, kind: input, shape index: {}]
  %s6 = inlined_call_operand.vmem [shape: bf16[32,128], index: 6, kind: input, shape index: {}]
  %s7 = inlined_call_operand.vmem [shape: f32[1,128], index: 7, kind: input, shape index: {}]
  %s8 = inlined_call_operand.hbm [shape: f32[112,128], index: 8, kind: output, shape index: {}]
  %s9 = sld [smem:[#allocation0]]
  $region42: #{tpu_custom_call.1} parent=0
    _
  %s11 = ssub.s32 1, %s9
  %s12 = scalar_select 0, %s11, %s9
  $region1: #{tpu_custom_call.1} parent=0
    #allocation2 [shape = 'u8[57344]{0}', space=vmem, size = 0xe000, scoped, tag = 'output window, operand 0, single buffered']
    #allocation3 [shape = 's32[1]{0}', space=sflag, size = 0x4, scoped, tag = 'scoped memory for tpu_custom_call.1']
    %13 = vsyncpa [#allocation3], 0
    // Predicated region
    $region2: #{tpu_custom_call.1} parent=1 // pred_check
      _
    $region3: #{tpu_custom_call.1} parent=1 // pred_check_branch
      %15 = sbr.rel (0) target = $region5
    $region4: #{tpu_custom_call.1} parent=1 // pred_region
      _
    $region5: #{tpu_custom_call.1} parent=1 // pred_fallthru
      _
    // Predicated region
    $region6: #{tpu_custom_call.1} parent=1 // pred_check
      _
    $region7: #{tpu_custom_call.1} parent=1 // pred_check_branch
      %17 = sbr.rel (0) target = $region9
    $region8: #{tpu_custom_call.1} parent=1 // pred_region
      _
    $region9: #{tpu_custom_call.1} parent=1 // pred_fallthru
      _
    // Predicated region
    $region10: #{tpu_custom_call.1} parent=1 // pred_check
      _
    $region11: #{tpu_custom_call.1} parent=1 // pred_check_branch
      %19 = sbr.rel (0) target = $region13
    $region12: #{tpu_custom_call.1} parent=1 // pred_region
      _
    $region13: #{tpu_custom_call.1} parent=1 // pred_fallthru
      _
    // Predicated region
    $region14: #{tpu_custom_call.1} parent=1 // pred_check
      _
    $region15: #{tpu_custom_call.1} parent=1 // pred_check_branch
      %21 = sbr.rel (0) target = $region17
    $region16: #{tpu_custom_call.1} parent=1 // pred_region
      _
    $region17: #{tpu_custom_call.1} parent=1 // pred_fallthru
      _
    // Predicated region
    $region18: #{tpu_custom_call.1} parent=1 // pred_check
      _
    $region19: #{tpu_custom_call.1} parent=1 // pred_check_branch
      %23 = sbr.rel (0) target = $region21
    $region20: #{tpu_custom_call.1} parent=1 // pred_region
      _
    $region21: #{tpu_custom_call.1} parent=1 // pred_fallthru
      _
    // Predicated region
    $region22: #{tpu_custom_call.1} parent=1 // pred_check
      _
    $region23: #{tpu_custom_call.1} parent=1 // pred_check_branch
      %25 = sbr.rel (0) target = $region25
    $region24: #{tpu_custom_call.1} parent=1 // pred_region
      _
    $region25: #{tpu_custom_call.1} parent=1 // pred_fallthru
      _
    // Predicated region
    $region26: #{tpu_custom_call.1} parent=1 // pred_check
      _
    $region27: #{tpu_custom_call.1} parent=1 // pred_check_branch
      %27 = sbr.rel (0) target = $region29
    $region28: #{tpu_custom_call.1} parent=1 // pred_region
      _
    $region29: #{tpu_custom_call.1} parent=1 // pred_fallthru
      _
    // Predicated region
    $region30: #{tpu_custom_call.1} parent=1 // pred_check
      _
    $region31: #{tpu_custom_call.1} parent=1 // pred_check_branch
      %29 = sbr.rel (0) target = $region33
    $region32: #{tpu_custom_call.1} parent=1 // pred_region
      _
    $region33: #{tpu_custom_call.1} parent=1 // pred_fallthru
      _
    %v31 = vld [vmem:[%s0] sm:$0xff]
    %v32 = vld [vmem:[%s0 + $0x8] sm:$0xff]
    %v33 = vld [vmem:[%s0 + $0x10] sm:$0xff]
    %v34 = vld [vmem:[%s0 + $0x18] sm:$0xff]
    %v35 = vld [vmem:[%s0 + $0x20] sm:$0xff]
    %v36 = vld [vmem:[%s0 + $0x28] sm:$0xff]
    %v37 = vld [vmem:[%s0 + $0x30] sm:$0xff]
    %v38 = vld [vmem:[%s0 + $0x38] sm:$0xff]
    %v39 = vld [vmem:[%s0 + $0x40] sm:$0xff]
    %v40 = vld [vmem:[%s0 + $0x48] sm:$0xff]
    %v41 = vld [vmem:[%s0 + $0x50] sm:$0xff]
    %v42 = vld [vmem:[%s0 + $0x58] sm:$0xff]
    %v43 = vld [vmem:[%s0 + $0x60] sm:$0xff]
    %v44 = vld [vmem:[%s0 + $0x68] sm:$0xff]
    %v45 = vpack.c.bf16 %v32, %v31
    %v46 = vpack.c.bf16 %v34, %v33
    %v47 = vpack.c.bf16 %v36, %v35
    %v48 = vpack.c.bf16 %v38, %v37
    %v49 = vpack.c.bf16 %v40, %v39
    %v50 = vpack.c.bf16 %v42, %v41
    %v51 = vpack.c.bf16 %v44, %v43
    %v52 = vld [vmem:[%s1] sm:$0xf]
    %v53 = vld [vmem:[%s1 + $0x4] sm:$0xf]
    %v54 = vld [vmem:[%s1 + $0x8] sm:$0xf]
    %v55 = vld [vmem:[%s1 + $0xc] sm:$0xf]
    %v56 = vld [vmem:[%s2] sm:$0x1]
    %v58 = vperm.slane %v56, 0
    %v64 = vunpack.c.l.b16 %v52
    %v65 = vunpack.c.l.b16 %v53
    %v66 = vunpack.c.l.b16 %v54
    %v67 = vunpack.c.l.b16 %v55
    %v68 = vpack.c.b16 %v65, %v64
    %v69 = vpack.c.b16 %v67, %v66
    %vm72 = vcmask 261120
    %v74 = vsel %vm72, %v45, 0
    %v77 = vsel %vm72, %v46, 0
    %v80 = vsel %vm72, %v47, 0
    %v83 = vsel %vm72, %v48, 0
    %v86 = vsel %vm72, %v49, 0
    %v89 = vsel %vm72, %v50, 0
    %v92 = vsel %vm72, %v51, 0
    %94 = vmatpush.bf16.msra.mxu0 0
    %95 = vmatpush.bf16.msra.mxu0 0
    %96 = vmatpush.bf16.msra.mxu0 0
    %97 = vmatpush.bf16.msra.mxu0 0
    %98 = vmatpush.bf16.msra.mxu0 0
    %99 = vmatpush.bf16.msra.mxu0 0
    %100 = vmatpush.bf16.msra.mxu0 %v69
    %101 = vmatpush.bf16.msra.mxu0 %v68
    %102 = vmatmul.bf16.gmra.mxu0 %v74
    %v103 = vpop.f32.mrf.mxu0
    %v104 = vadd.f32 %v58, %v103
    %v105 = vpop.f32.mrf.mxu0
    %v106 = vadd.f32 %v58, %v105
    %107 = vmatmul.bf16.gmra.mxu0 %v77
    %v108 = vpop.f32.mrf.mxu0
    %v109 = vadd.f32 %v58, %v108
    %v110 = vpop.f32.mrf.mxu0
    %v111 = vadd.f32 %v58, %v110
    %112 = vmatmul.bf16.gmra.mxu0 %v80
    %v113 = vpop.f32.mrf.mxu0
    %v114 = vadd.f32 %v58, %v113
    %v115 = vpop.f32.mrf.mxu0
    %v116 = vadd.f32 %v58, %v115
    %117 = vmatmul.bf16.gmra.mxu0 %v83
    %v118 = vpop.f32.mrf.mxu0
    %v119 = vadd.f32 %v58, %v118
    %v120 = vpop.f32.mrf.mxu0
    %v121 = vadd.f32 %v58, %v120
    %122 = vmatmul.bf16.gmra.mxu0 %v86
    %v123 = vpop.f32.mrf.mxu0
    %v124 = vadd.f32 %v58, %v123
    %v125 = vpop.f32.mrf.mxu0
    %v126 = vadd.f32 %v58, %v125
    %127 = vmatmul.bf16.gmra.mxu0 %v89
    %v128 = vpop.f32.mrf.mxu0
    %v129 = vadd.f32 %v58, %v128
    %v130 = vpop.f32.mrf.mxu0
    %v131 = vadd.f32 %v58, %v130
    %132 = vmatmul.bf16.gmra.mxu0 %v92
    %v133 = vpop.f32.mrf.mxu0
    %v134 = vadd.f32 %v58, %v133
    %v135 = vpop.f32.mrf.mxu0
    %v136 = vadd.f32 %v58, %v135
    %137 = vdwg.mxu0
    %v138 = vmax.f32 %v104, 0.0
    %v139 = vmax.f32 %v106, 0.0
    %v140 = vmax.f32 %v109, 0.0
    %v141 = vmax.f32 %v111, 0.0
    %v142 = vmax.f32 %v114, 0.0
    %v143 = vmax.f32 %v116, 0.0
    %v144 = vmax.f32 %v119, 0.0
    %v145 = vmax.f32 %v121, 0.0
    %v146 = vmax.f32 %v124, 0.0
    %v147 = vmax.f32 %v126, 0.0
    %v148 = vmax.f32 %v129, 0.0
    %v149 = vmax.f32 %v131, 0.0
    %v150 = vmax.f32 %v134, 0.0
    %v151 = vmax.f32 %v136, 0.0
    %v152 = vpack.c.bf16 %v139, %v138
    %v153 = vpack.c.bf16 %v141, %v140
    %v154 = vpack.c.bf16 %v143, %v142
    %v155 = vpack.c.bf16 %v145, %v144
    %v156 = vpack.c.bf16 %v147, %v146
    %v157 = vpack.c.bf16 %v149, %v148
    %v158 = vpack.c.bf16 %v151, %v150
    %v159 = vld [vmem:[%s3] sm:$0xf]
    %v160 = vld [vmem:[%s3 + $0x4] sm:$0xf]
    %v161 = vld [vmem:[%s3 + $0x8] sm:$0xf]
    %v162 = vld [vmem:[%s3 + $0xc] sm:$0xf]
    %v163 = vld [vmem:[%s4] sm:$0x1]
    %v165 = vperm.slane %v163, 0
    %v171 = vunpack.c.l.b16 %v159
    %v172 = vunpack.c.l.b16 %v160
    %v173 = vunpack.c.l.b16 %v161
    %v174 = vunpack.c.l.b16 %v162
    %v175 = vpack.c.b16 %v172, %v171
    %v176 = vpack.c.b16 %v174, %v173
    %v180 = vsel %vm72, %v152, 0
    %v183 = vsel %vm72, %v153, 0
    %v186 = vsel %vm72, %v154, 0
    %v189 = vsel %vm72, %v155, 0
    %v192 = vsel %vm72, %v156, 0
    %v195 = vsel %vm72, %v157, 0
    %v198 = vsel %vm72, %v158, 0
    %200 = vmatpush.bf16.msra.mxu0 0
    %201 = vmatpush.bf16.msra.mxu0 0
    %202 = vmatpush.bf16.msra.mxu0 0
    %203 = vmatpush.bf16.msra.mxu0 0
    %204 = vmatpush.bf16.msra.mxu0 0
    %205 = vmatpush.bf16.msra.mxu0 0
    %206 = vmatpush.bf16.msra.mxu0 %v176
    %207 = vmatpush.bf16.msra.mxu0 %v175
    %208 = vmatmul.bf16.gmra.mxu0 %v180
    %v209 = vpop.f32.mrf.mxu0
    %v210 = vadd.f32 %v165, %v209
    %v211 = vpop.f32.mrf.mxu0
    %v212 = vadd.f32 %v165, %v211
    %213 = vmatmul.bf16.gmra.mxu0 %v183
    %v214 = vpop.f32.mrf.mxu0
    %v215 = vadd.f32 %v165, %v214
    %v216 = vpop.f32.mrf.mxu0
    %v217 = vadd.f32 %v165, %v216
    %218 = vmatmul.bf16.gmra.mxu0 %v186
    %v219 = vpop.f32.mrf.mxu0
    %v220 = vadd.f32 %v165, %v219
    %v221 = vpop.f32.mrf.mxu0
    %v222 = vadd.f32 %v165, %v221
    %223 = vmatmul.bf16.gmra.mxu0 %v189
    %v224 = vpop.f32.mrf.mxu0
    %v225 = vadd.f32 %v165, %v224
    %v226 = vpop.f32.mrf.mxu0
    %v227 = vadd.f32 %v165, %v226
    %228 = vmatmul.bf16.gmra.mxu0 %v192
    %v229 = vpop.f32.mrf.mxu0
    %v230 = vadd.f32 %v165, %v229
    %v231 = vpop.f32.mrf.mxu0
    %v232 = vadd.f32 %v165, %v231
    %233 = vmatmul.bf16.gmra.mxu0 %v195
    %v234 = vpop.f32.mrf.mxu0
    %v235 = vadd.f32 %v165, %v234
    %v236 = vpop.f32.mrf.mxu0
    %v237 = vadd.f32 %v165, %v236
    %238 = vmatmul.bf16.gmra.mxu0 %v198
    %v239 = vpop.f32.mrf.mxu0
    %v240 = vadd.f32 %v165, %v239
    %v241 = vpop.f32.mrf.mxu0
    %v242 = vadd.f32 %v165, %v241
    %243 = vdwg.mxu0
    %v244 = vmax.f32 %v210, 0.0
    %v245 = vmax.f32 %v212, 0.0
    %v246 = vmax.f32 %v215, 0.0
    %v247 = vmax.f32 %v217, 0.0
    %v248 = vmax.f32 %v220, 0.0
    %v249 = vmax.f32 %v222, 0.0
    %v250 = vmax.f32 %v225, 0.0
    %v251 = vmax.f32 %v227, 0.0
    %v252 = vmax.f32 %v230, 0.0
    %v253 = vmax.f32 %v232, 0.0
    %v254 = vmax.f32 %v235, 0.0
    %v255 = vmax.f32 %v237, 0.0
    %v256 = vmax.f32 %v240, 0.0
    %v257 = vmax.f32 %v242, 0.0
    %v258 = vpack.c.bf16 %v245, %v244
    %v259 = vpack.c.bf16 %v247, %v246
    %v260 = vpack.c.bf16 %v249, %v248
    %v261 = vpack.c.bf16 %v251, %v250
    %v262 = vpack.c.bf16 %v253, %v252
    %v263 = vpack.c.bf16 %v255, %v254
    %v264 = vpack.c.bf16 %v257, %v256
    %v265 = vld [vmem:[%s5] sm:$0xf]
    %v266 = vld [vmem:[%s5 + $0x4] sm:$0xf]
    %v267 = vld [vmem:[%s5 + $0x8] sm:$0xf]
    %v268 = vld [vmem:[%s5 + $0xc] sm:$0xf]
    %v269 = vld [vmem:[%s6] sm:$0xf]
    %v270 = vld [vmem:[%s6 + $0x4] sm:$0xf]
    %v271 = vld [vmem:[%s6 + $0x8] sm:$0xf]
    %v272 = vld [vmem:[%s6 + $0xc] sm:$0xf]
    %v277 = vunpack.c.l.b16 %v269
    %v278 = vunpack.c.l.b16 %v270
    %v279 = vunpack.c.l.b16 %v271
    %v280 = vunpack.c.l.b16 %v272
    %v281 = vpack.c.b16 %v278, %v277
    %v282 = vpack.c.b16 %v280, %v279
    %285 = vmatpush.bf16.msra.mxu0 0
    %286 = vmatpush.bf16.msra.mxu0 0
    %287 = vmatpush.bf16.msra.mxu0 0
    %288 = vmatpush.bf16.msra.mxu0 0
    %289 = vmatpush.bf16.msra.mxu0 0
    %290 = vmatpush.bf16.msra.mxu0 0
    %291 = vmatpush.bf16.msra.mxu0 %v282
    %292 = vmatpush.bf16.msra.mxu0 %v281
    %293 = vmatmul.bf16.gmra.mxu0 %v74
    %v294 = vpop.f32.mrf.mxu0
    %v295 = vadd.f32 0.0, %v294
    %v296 = vpop.f32.mrf.mxu0
    %v297 = vadd.f32 0.0, %v296
    %298 = vmatmul.bf16.gmra.mxu0 %v77
    %v299 = vpop.f32.mrf.mxu0
    %v300 = vadd.f32 0.0, %v299
    %v301 = vpop.f32.mrf.mxu0
    %v302 = vadd.f32 0.0, %v301
    %303 = vmatmul.bf16.gmra.mxu0 %v80
    %v304 = vpop.f32.mrf.mxu0
    %v305 = vadd.f32 0.0, %v304
    %v306 = vpop.f32.mrf.mxu0
    %v307 = vadd.f32 0.0, %v306
    %308 = vmatmul.bf16.gmra.mxu0 %v83
    %v309 = vpop.f32.mrf.mxu0
    %v310 = vadd.f32 0.0, %v309
    %v311 = vpop.f32.mrf.mxu0
    %v312 = vadd.f32 0.0, %v311
    %313 = vmatmul.bf16.gmra.mxu0 %v86
    %v314 = vpop.f32.mrf.mxu0
    %v315 = vadd.f32 0.0, %v314
    %v316 = vpop.f32.mrf.mxu0
    %v317 = vadd.f32 0.0, %v316
    %318 = vmatmul.bf16.gmra.mxu0 %v89
    %v319 = vpop.f32.mrf.mxu0
    %v320 = vadd.f32 0.0, %v319
    %v321 = vpop.f32.mrf.mxu0
    %v322 = vadd.f32 0.0, %v321
    %323 = vmatmul.bf16.gmra.mxu0 %v92
    %v324 = vpop.f32.mrf.mxu0
    %v325 = vadd.f32 0.0, %v324
    %v326 = vpop.f32.mrf.mxu0
    %v327 = vadd.f32 0.0, %v326
    %328 = vdwg.mxu0
    %v333 = vunpack.c.l.b16 %v265
    %v334 = vunpack.c.l.b16 %v266
    %v335 = vunpack.c.l.b16 %v267
    %v336 = vunpack.c.l.b16 %v268
    %v337 = vpack.c.b16 %v334, %v333
    %v338 = vpack.c.b16 %v336, %v335
    %v342 = vsel %vm72, %v258, 0
    %v345 = vsel %vm72, %v259, 0
    %v348 = vsel %vm72, %v260, 0
    %v351 = vsel %vm72, %v261, 0
    %v354 = vsel %vm72, %v262, 0
    %v357 = vsel %vm72, %v263, 0
    %v360 = vsel %vm72, %v264, 0
    %362 = vmatpush.bf16.msra.mxu0 0
    %363 = vmatpush.bf16.msra.mxu0 0
    %364 = vmatpush.bf16.msra.mxu0 0
    %365 = vmatpush.bf16.msra.mxu0 0
    %366 = vmatpush.bf16.msra.mxu0 0
    %367 = vmatpush.bf16.msra.mxu0 0
    %368 = vmatpush.bf16.msra.mxu0 %v338
    %369 = vmatpush.bf16.msra.mxu0 %v337
    %370 = vmatmul.bf16.gmra.mxu0 %v342
    %v371 = vpop.f32.mrf.mxu0
    %v372 = vadd.f32 %v295, %v371
    %v373 = vpop.f32.mrf.mxu0
    %v374 = vadd.f32 %v297, %v373
    %375 = vmatmul.bf16.gmra.mxu0 %v345
    %v376 = vpop.f32.mrf.mxu0
    %v377 = vadd.f32 %v300, %v376
    %v378 = vpop.f32.mrf.mxu0
    %v379 = vadd.f32 %v302, %v378
    %380 = vmatmul.bf16.gmra.mxu0 %v348
    %v381 = vpop.f32.mrf.mxu0
    %v382 = vadd.f32 %v305, %v381
    %v383 = vpop.f32.mrf.mxu0
    %v384 = vadd.f32 %v307, %v383
    %385 = vmatmul.bf16.gmra.mxu0 %v351
    %v386 = vpop.f32.mrf.mxu0
    %v387 = vadd.f32 %v310, %v386
    %v388 = vpop.f32.mrf.mxu0
    %v389 = vadd.f32 %v312, %v388
    %390 = vmatmul.bf16.gmra.mxu0 %v354
    %v391 = vpop.f32.mrf.mxu0
    %v392 = vadd.f32 %v315, %v391
    %v393 = vpop.f32.mrf.mxu0
    %v394 = vadd.f32 %v317, %v393
    %395 = vmatmul.bf16.gmra.mxu0 %v357
    %v396 = vpop.f32.mrf.mxu0
    %v397 = vadd.f32 %v320, %v396
    %v398 = vpop.f32.mrf.mxu0
    %v399 = vadd.f32 %v322, %v398
    %400 = vmatmul.bf16.gmra.mxu0 %v360
    %v401 = vpop.f32.mrf.mxu0
    %v402 = vadd.f32 %v325, %v401
    %v403 = vpop.f32.mrf.mxu0
    %v404 = vadd.f32 %v327, %v403
    %405 = vdwg.mxu0
    %v406 = vld [vmem:[%s7] sm:$0x1]
    %v408 = vperm.slane %v406, 0
    %v410 = vadd.f32 %v372, %v408
    %v411 = vadd.f32 %v374, %v408
    %v412 = vadd.f32 %v377, %v408
    %v413 = vadd.f32 %v379, %v408
    %v414 = vadd.f32 %v382, %v408
    %v415 = vadd.f32 %v384, %v408
    %v416 = vadd.f32 %v387, %v408
    %v417 = vadd.f32 %v389, %v408
    %v418 = vadd.f32 %v392, %v408
    %v419 = vadd.f32 %v394, %v408
    %v420 = vadd.f32 %v397, %v408
    %v421 = vadd.f32 %v399, %v408
    %v422 = vadd.f32 %v402, %v408
    %v423 = vadd.f32 %v404, %v408
    %424 = vst [vmem:[#allocation2] sm:$0xff] %v410
    %425 = vst [vmem:[#allocation2 + $0x8] sm:$0xff] %v411
    %426 = vst [vmem:[#allocation2 + $0x10] sm:$0xff] %v412
    %427 = vst [vmem:[#allocation2 + $0x18] sm:$0xff] %v413
    %428 = vst [vmem:[#allocation2 + $0x20] sm:$0xff] %v414
    %429 = vst [vmem:[#allocation2 + $0x28] sm:$0xff] %v415
    %430 = vst [vmem:[#allocation2 + $0x30] sm:$0xff] %v416
    %431 = vst [vmem:[#allocation2 + $0x38] sm:$0xff] %v417
    %432 = vst [vmem:[#allocation2 + $0x40] sm:$0xff] %v418
    %433 = vst [vmem:[#allocation2 + $0x48] sm:$0xff] %v419
    %434 = vst [vmem:[#allocation2 + $0x50] sm:$0xff] %v420
    %435 = vst [vmem:[#allocation2 + $0x58] sm:$0xff] %v421
    %436 = vst [vmem:[#allocation2 + $0x60] sm:$0xff] %v422
    %437 = vst [vmem:[#allocation2 + $0x68] sm:$0xff] %v423
    // Predicated region
    $region34: #{tpu_custom_call.1} parent=1 // pred_check
      _
    $region35: #{tpu_custom_call.1} parent=1 // pred_check_branch
      %439 = sbr.rel (0) target = $region37
    $region36: #{tpu_custom_call.1} parent=1 // pred_region
      %441 = vsyncadd [#allocation3], 0
      %s442 = sshll.u32 [#allocation2], 4
      %s443 = int_to_ptr.vmem [resolvable:$true] %s442
      %s444 = sshll.u32 %s8, 4
      %s445 = int_to_ptr.hbm [resolvable:$true] %s444
      %450 = dma.vmem_to_hbm [thread:$0]  %s443, 1792, %s445, [#allocation3], 128, 128, 8
    $region37: #{tpu_custom_call.1} parent=1 // pred_fallthru
      _
    // Predicated region
    $region38: #{tpu_custom_call.1} parent=1 // pred_check
      _
    $region39: #{tpu_custom_call.1} parent=1 // pred_check_branch
      %452 = sbr.rel (0) target = $region41
    $region40: #{tpu_custom_call.1} parent=1 // pred_region
      %454 = dma.done [#allocation3], 1792
    $region41: #{tpu_custom_call.1} parent=1 // pred_fallthru
      _
    %455 = vsyncpa [#allocation3], 1

</llo_original>
